<compile_context>
chip_gen: v7x
topology: tpu7x:2x2x1
jax: 0.10.0
libtpu: 0.0.40
codegen_flags: <defaults>
</compile_context>

<pallas_src>
import functools

import jax
import jax.numpy as jnp
from jax.experimental import pallas as pl
from jax.experimental.pallas import tpu as pltpu

_LANE = 128
_SUBLANE = 8
# ~2 MiB input block (f32); with double-buffered input+output that is ~8 MiB of
# VMEM, comfortably under the 32 MiB scoped default and v7x's 64 MiB physical VMEM.
_TARGET_BLOCK_BYTES = 2 * 1024 * 1024


def _actq_kernel(params_ref, x_ref, o_ref, *, qn, qp):
    # params_ref: SMEM (2,) f32 = [scale, 1/scale] (reciprocal hoisted to wrapper).
    s = params_ref[0]
    inv_s = params_ref[1]
    # Load native dtype, do the math in f32 (v5e VPU has no bf16 math), store native.
    x = x_ref[...].astype(jnp.float32)
    x_clip = jnp.clip(x * inv_s, qn, qp)                       # clamp(x / scale, Qn, Qp)
    o_ref[...] = (jnp.round(x_clip) * s).astype(o_ref.dtype)   # round-half-even == torch.round


def _choose_width(total):
    """Widest lane-dense (multiple of 128) last dim that divides `total`."""
    for w in (2048, 1024, 512, 256, _LANE):
        if total % w == 0:
            return w
    return None


def actq_pallas(x, scale, inv_scale, nbits=4, signed=False):
    """Quantize `x` with a fixed running scale using a Pallas elementwise kernel."""
    if signed:
        qn, qp = float(-(2 ** (nbits - 1))), float(2 ** (nbits - 1) - 1)
    else:
        qn, qp = 0.0, float(2 ** nbits - 1)

    orig_shape = x.shape
    orig_dtype = x.dtype
    itemsize = jnp.dtype(orig_dtype).itemsize
    total = x.size

    flat = x.reshape(-1)
    width = _choose_width(total)
    pad = 0
    if width is None:
        # Rare tail case (total not a multiple of 128): pad only to the next lane multiple.
        width = _LANE
        pad = (-total) % _LANE
        flat = jnp.pad(flat, (0, pad))
    x2d = flat.reshape(-1, width)
    rows = x2d.shape[0]

    # VMEM-byte-capped block rows: multiple of 8 sublanes; if rows doesn't divide,
    # the cdiv grid lets Pallas mask the last partial block (no full-array padding).
    rows_target = max(
        _SUBLANE,
        (_TARGET_BLOCK_BYTES // (width * itemsize)) // _SUBLANE * _SUBLANE,
    )
    block_rows = rows if rows <= rows_target else rows_target
    grid = (pl.cdiv(rows, block_rows),)

    params = jnp.stack([scale, inv_scale]).astype(jnp.float32)

    out2d = pl.pallas_call(
        functools.partial(_actq_kernel, qn=qn, qp=qp),
        out_shape=jax.ShapeDtypeStruct((rows, width), orig_dtype),
        grid=grid,
        in_specs=[
            pl.BlockSpec(memory_space=pltpu.MemorySpace.SMEM),    # [scale, 1/scale]
            pl.BlockSpec((block_rows, width), lambda i: (i, 0)),  # activation tile
        ],
        out_specs=pl.BlockSpec((block_rows, width), lambda i: (i, 0)),
        compiler_params=pltpu.CompilerParams(
            dimension_semantics=("parallel",)),  # independent blocks -> v7x dual-TC sharding
    )(params, x2d)

    if pad:
        out = out2d.reshape(-1)[:total].reshape(orig_shape)
    else:
        out = out2d.reshape(orig_shape)
    return out


def concat_q_forward(seq, dim=0, nbits=4, signed=False, l2=True):
    """Pallas equivalent of ConcatQ.forward(*seq)."""
    qp = (2 ** (nbits - 1) - 1) if signed else (2 ** nbits - 1)
    # Synthetic deterministic init of ActQ.running_scale (no checkpoint load):
    # per-input abs-max reduction so cat(seq) is never materialized for the scale.
    max_abs = functools.reduce(
        jnp.maximum, [jnp.max(jnp.abs(x)).astype(jnp.float32) for x in seq]
    )
    running_scale = jnp.maximum(max_abs / qp, 1e-8)
    inv_scale = 1.0 / running_scale

    # Quantize each input exactly once. Because all inputs share the same running
    # scale, quantize(cat(seq)) == cat(quantize(seq_i)), so concat_q is assembled
    # from the already-quantized pieces (halves HBM traffic vs. quantizing twice).
    # TODO(synk): STE gradient trick and ln_error's l1/l2 error term are
    # training/backward-only; forward value is exactly the quantized tensor.
    seq_q = [
        actq_pallas(x, running_scale, inv_scale, nbits=nbits, signed=signed)
        for x in seq
    ]
    concat_q = jnp.concatenate(seq_q, axis=dim)
    return concat_q, seq_q


def _ref_quant(x, scale, inv_scale, nbits=4, signed=False):
    """Plain-JAX reference of the ActQ value path."""
    if signed:
        qn, qp = -(2 ** (nbits - 1)), 2 ** (nbits - 1) - 1
    else:
        qn, qp = 0.0, 2 ** nbits - 1
    return jnp.round(jnp.clip(x.astype(jnp.float32) * inv_scale, qn, qp)) * scale


if __name__ == "__main__":
    key = jax.random.PRNGKey(0)
    k1, k2 = jax.random.split(key)
    # Two NCHW activation tensors concatenated along dim=0 (ConcatQ default).
    x1 = jax.random.normal(k1, (2, 4, 16, 16), dtype=jnp.float32)
    x2 = jax.random.normal(k2, (2, 4, 16, 16), dtype=jnp.float32)

    nbits, signed = 4, False
    concat_q, seq_q = concat_q_forward([x1, x2], dim=0, nbits=nbits, signed=signed, l2=True)
    concat_q = jax.block_until_ready(concat_q)
    seq_q = [jax.block_until_ready(y) for y in seq_q]

    assert concat_q.shape == (4, 4, 16, 16)
    assert all(y.shape == (2, 4, 16, 16) for y in seq_q)

    # Reference: quantize the concatenation with the same shared running scale
    # (plain JAX) and compare against the Pallas result.
    qp = 2 ** nbits - 1
    max_abs = jnp.maximum(jnp.max(jnp.abs(x1)), jnp.max(jnp.abs(x2))).astype(jnp.float32)
    scale = jnp.maximum(max_abs / qp, 1e-8)
    inv_scale = 1.0 / scale
    x_cat = jnp.concatenate([x1, x2], axis=0)
    ref_cat = _ref_quant(x_cat, scale, inv_scale, nbits=nbits, signed=signed)
    ref_seq = [_ref_quant(x, scale, inv_scale, nbits=nbits, signed=signed) for x in (x1, x2)]

    assert bool(jnp.allclose(concat_q, ref_cat, atol=1e-6))
    assert all(bool(jnp.allclose(y, r, atol=1e-6)) for y, r in zip(seq_q, ref_seq))

    print("KERNEL_OK")
</pallas_src>

<mosaic_0001>
module attributes {stable_mosaic.version = 11 : i64} {
  func.func @_actq_kernel(%arg0: i32, %arg1: memref<2xf32, #tpu.memory_space<smem>>, %arg2: memref<1x2048xf32, #tpu.memory_space<vmem>>, %arg3: memref<1x2048xf32, #tpu.memory_space<vmem>>) attributes {dimension_semantics = [#tpu.dimension_semantics<parallel>], iteration_bounds = array<i64: 1>, scalar_prefetch = 0 : i64, scratch_operands = 0 : i64, tpu.core_type = #tpu.core_type<tc>, window_params = [{transform_indices = @transform_0, window_bounds = array<i64: 2>}, {transform_indices = @transform_1, window_bounds = array<i64: 1, 2048>}, {transform_indices = @transform_2, window_bounds = array<i64: 1, 2048>}]} {
    %c0 = arith.constant 0 : index
    %0 = memref.load %arg1[%c0] : memref<2xf32, #tpu.memory_space<smem>>
    %c1 = arith.constant 1 : index
    %1 = memref.load %arg1[%c1] : memref<2xf32, #tpu.memory_space<smem>>
    %c0_0 = arith.constant 0 : index
    %c0_1 = arith.constant 0 : index
    %2 = vector.load %arg2[%c0_0, %c0_1] : memref<1x2048xf32, #tpu.memory_space<vmem>>, vector<1x2048xf32>
    %3 = vector.broadcast %1 : f32 to vector<1x2048xf32>
    %4 = arith.mulf %2, %3 : vector<1x2048xf32>
    %cst = arith.constant 0.000000e+00 : f32
    %cst_2 = arith.constant 1.500000e+01 : f32
    %5 = vector.broadcast %cst : f32 to vector<1x2048xf32>
    %6 = arith.maximumf %5, %4 : vector<1x2048xf32>
    %7 = vector.broadcast %cst_2 : f32 to vector<1x2048xf32>
    %8 = arith.minimumf %7, %6 : vector<1x2048xf32>
    %9 = math.roundeven %8 : vector<1x2048xf32>
    %10 = vector.broadcast %0 : f32 to vector<1x2048xf32>
    %11 = arith.mulf %9, %10 : vector<1x2048xf32>
    %c0_3 = arith.constant 0 : index
    %c0_4 = arith.constant 0 : index
    %12 = vector.load %arg3[%c0_3, %c0_4] : memref<1x2048xf32, #tpu.memory_space<vmem>>, vector<1x2048xf32>
    tpu.vector_store %arg3[%c0_3, %c0_4], %11 {strides = array<i32>} : memref<1x2048xf32, #tpu.memory_space<vmem>>, vector<1x2048xf32>,
    return
  }
  func.func @transform_0(%arg0: i32) -> i32 {
    %c0_i32 = arith.constant 0 : i32
    %c0_i32_0 = arith.constant 0 : i32
    return %c0_i32 : i32
  }
  func.func @transform_1(%arg0: i32) -> (i32, i32) {
    %c0_i32 = arith.constant 0 : i32
    %c0_i32_0 = arith.constant 0 : i32
    return %arg0, %c0_i32 : i32, i32
  }
  func.func @transform_2(%arg0: i32) -> (i32, i32) {
    %c0_i32 = arith.constant 0 : i32
    %c0_i32_0 = arith.constant 0 : i32
    return %arg0, %c0_i32 : i32, i32
  }
}

</mosaic_0001>

<llo_original>
// kernel: tpu_custom_call.1
$region0: #{tpu_custom_call.1}
  #allocation0 [shape = 'u32[]', space=smem, size = 0x4, offset = 0x4, fixed_abs, tag = 'smem constant byte address 0x4 - core index']
  #allocation1 [shape = 'u32[144,128]{1,0:T(1,128)}', space=vmem, size = 0x12000, scoped, tag = 'internal scratch']
  %s0 = inlined_call_operand.hbm [shape: f32[2], index: 0, kind: input, shape index: {}]
  %s1 = inlined_call_operand.hbm [shape: f32[1,2048], index: 1, kind: input, shape index: {}]
  %s2 = inlined_call_operand.hbm [shape: f32[1,2048], index: 2, kind: output, shape index: {}]
  %s3 = sld [smem:[#allocation0]]
  $region26: #{tpu_custom_call.1} parent=0
    _
  %s5 = ssub.s32 1, %s3
  %s6 = scalar_select 0, %s5, %s3
  $region1: #{tpu_custom_call.1} parent=0
    #allocation2 [shape = 'u8[512]{0}', space=smem, size = 0x200, scoped, tag = 'input window, operand 0, single buffered']
    #allocation3 [shape = 's32[1]{0}', space=sflag, size = 0x4, scoped, tag = 'scoped memory for tpu_custom_call.1']
    #allocation4 [shape = 's32[1]{0}', space=sflag, size = 0x4, scoped, tag = 'scoped memory for tpu_custom_call.1']
    #allocation5 [shape = 's32[1]{0}', space=sflag, size = 0x4, scoped, tag = 'scoped memory for tpu_custom_call.1']
    #allocation6 [shape = 'u8[8192]{0}', space=vmem, size = 0x2000, scoped, tag = 'input window, operand 1, single buffered']
    #allocation7 [shape = 'u8[8192]{0}', space=vmem, size = 0x2000, scoped, tag = 'output window, operand 0, single buffered']
    %7 = vsyncpa [#allocation5], 0
    %8 = vsyncpa [#allocation3], 0
    %9 = vsyncpa [#allocation4], 0
    // Predicated region
    $region2: #{tpu_custom_call.1} parent=1 // pred_check
      _
    $region3: #{tpu_custom_call.1} parent=1 // pred_check_branch
      %11 = sbr.rel (0) target = $region5
    $region4: #{tpu_custom_call.1} parent=1 // pred_region
      %s13 = ssub.s32 16, 16
      %14 = vsyncadd [#allocation5], %s13
      %17 = dma.hbm_to_smem %s0, 16, [#allocation2], [#allocation5]
    $region5: #{tpu_custom_call.1} parent=1 // pred_fallthru
      _
    // Predicated region
    $region6: #{tpu_custom_call.1} parent=1 // pred_check
      _
    $region7: #{tpu_custom_call.1} parent=1 // pred_check_branch
      %19 = sbr.rel (0) target = $region9
    $region8: #{tpu_custom_call.1} parent=1 // pred_region
      %s21 = ssub.s32 256, 256
      %22 = vsyncadd [#allocation3], %s21
      %s24 = sshll.u32 [#allocation6], 4
      %s25 = int_to_ptr.vmem [resolvable:$true] %s24
      %27 = dma.hbm_to_vmem [thread:$0]  %s1, 256, %s25, [#allocation3]
    $region9: #{tpu_custom_call.1} parent=1 // pred_fallthru
      _
    // Predicated region
    $region10: #{tpu_custom_call.1} parent=1 // pred_check
      _
    $region11: #{tpu_custom_call.1} parent=1 // pred_check_branch
      %29 = sbr.rel (0) target = $region13
    $region12: #{tpu_custom_call.1} parent=1 // pred_region
      %30 = dma.done [#allocation5], 16
    $region13: #{tpu_custom_call.1} parent=1 // pred_fallthru
      _
    // Predicated region
    $region14: #{tpu_custom_call.1} parent=1 // pred_check
      _
    $region15: #{tpu_custom_call.1} parent=1 // pred_check_branch
      %32 = sbr.rel (0) target = $region17
    $region16: #{tpu_custom_call.1} parent=1 // pred_region
      %33 = dma.done [#allocation3], 256
    $region17: #{tpu_custom_call.1} parent=1 // pred_fallthru
      _
    %34 = sfence
    %s35 = sld [smem:[#allocation2]]
    %s36 = sld [smem:[#allocation2 + $0x1]]
    %v37 = vld [vmem:[#allocation6] sm:$0xff]
    %v38 = vld [vmem:[#allocation6 + $0x8] sm:$0xff]
    %v39 = vstv %s36
    %v40 = vmul.f32 %v37, %v39
    %v41 = vmul.f32 %v38, %v39
    %v42 = vmax.f32 %v40, 0.0
    %v43 = vmax.f32 %v41, 0.0
    %v44 = vmin.f32 %v42, 15.0
    %v45 = vmin.f32 %v43, 15.0
    %v46 = vround.ne.pseudo %v44
    %v47 = vround.ne.pseudo %v45
    %v48 = vstv %s35
    %v49 = vmul.f32 %v46, %v48
    %v50 = vmul.f32 %v47, %v48
    %51 = vst [vmem:[#allocation7] sm:$0xff] %v49
    %52 = vst [vmem:[#allocation7 + $0x8] sm:$0xff] %v50
    // Predicated region
    $region18: #{tpu_custom_call.1} parent=1 // pred_check
      _
    $region19: #{tpu_custom_call.1} parent=1 // pred_check_branch
      %54 = sbr.rel (0) target = $region21
    $region20: #{tpu_custom_call.1} parent=1 // pred_region
      %s56 = ssub.s32 256, 256
      %57 = vsyncadd [#allocation4], %s56
      %s59 = sshll.u32 [#allocation7], 4
      %s60 = int_to_ptr.vmem [resolvable:$true] %s59
      %62 = dma.vmem_to_hbm [thread:$0]  %s60, 256, %s2, [#allocation4]
    $region21: #{tpu_custom_call.1} parent=1 // pred_fallthru
      _
    // Predicated region
    $region22: #{tpu_custom_call.1} parent=1 // pred_check
      _
    $region23: #{tpu_custom_call.1} parent=1 // pred_check_branch
      %64 = sbr.rel (0) target = $region25
    $region24: #{tpu_custom_call.1} parent=1 // pred_region
      %65 = dma.done [#allocation4], 256
    $region25: #{tpu_custom_call.1} parent=1 // pred_fallthru
      _
    %66 = vsyncpa [#allocation3], 1
    %67 = vsyncpa [#allocation4], 1
    %68 = vsyncpa [#allocation5], 1

</llo_original>
